<compile_context>
chip_gen: v6e
topology: v6e:2x2x1
jax: 0.10.0
libtpu: 0.0.40
codegen_flags: <defaults>
</compile_context>

<pallas_src>
import functools
import math

import jax
import jax.numpy as jnp
from jax.experimental import pallas as pl
from jax.experimental.pallas import tpu as pltpu


def _round_up(x, m):
    return ((x + m - 1) // m) * m


def _nt_xent_kernel(q_ref, k_ref, out_ref, m_ref, l_ref, *,
                    n_valid, n_pad, needs_mask):
    """One (row_tile, col_tile) grid step; the column axis is the reduction."""
    i = pl.program_id(0)
    j = pl.program_id(1)
    nj = pl.num_programs(1)
    tm = q_ref.shape[0]
    tn = k_ref.shape[0]

    @pl.when(j == 0)
    def _init():
        m_ref[...] = jnp.full_like(m_ref, -1e30)
        l_ref[...] = jnp.zeros_like(l_ref)

    # Logits tile, already divided by temperature (scale was folded into the
    # pre-normalized bf16 inputs).  bf16 x bf16 -> f32 on the MXU; the last
    # dims of both operands are contracted so no transposed key copy is made.
    s = jax.lax.dot_general(q_ref[...], k_ref[...], (((1,), (1,)), ((), ())),
                            preferred_element_type=jnp.float32)

    # Online logsumexp with lane-replicated (tm, 128) running state.
    m_prev = m_ref[...]
    l_prev = l_ref[...]
    m_curr = jnp.max(s, axis=1, keepdims=True)                 # (tm, 1)
    m_next = jnp.maximum(m_prev, m_curr)                       # (tm, 128)
    reps = tn // 128                                           # tn is 128-aligned
    m_bcast = m_next if reps == 1 else jnp.tile(m_next, (1, reps))
    p = jnp.exp(s - m_bcast)                                   # (tm, tn)
    alpha = jnp.exp(m_prev - m_next)                           # (tm, 128)
    l_ref[...] = alpha * l_prev + jnp.sum(p, axis=1, keepdims=True)
    m_ref[...] = m_next

    # Finalize this row block on the last column tile.
    @pl.when(j == nj - 1)
    def _finalize():
        # Diagonal logit L[i,i]/t == ||q_i||^2 of the pre-scaled bf16 row; this
        # matches the bf16-MXU diagonal (and is 0 for an all-zero row, matching
        # F.normalize's eps clamp).  O(tm*d) once per row tile.
        qf = q_ref[...].astype(jnp.float32)
        diag = jnp.sum(qf * qf, axis=1, keepdims=True)         # (tm, 1)
        m = m_ref[...]
        l = l_ref[...]
        if needs_mask:
            # Padded key rows are exact zeros -> each padded column contributed
            # exp(0 - m) to the running sum; remove them all at once here
            # instead of masking every (tm, tn) tile in the inner loop.
            l = l - float(n_pad - n_valid) * jnp.exp(-m)
        per_row = m + jnp.log(l) - diag                        # lse - diag
        if needs_mask:
            rows = i * tm + jax.lax.broadcasted_iota(jnp.int32, (tm, 1), 0)
            per_row = jnp.where(rows < n_valid, per_row, 0.0)
        out_ref[...] = per_row[:, :1]


def _choose_tiles(n, d, vmem_budget):
    """Row/column tiles: power-of-two multiples of 128 (so both divide the
    padded N), sized for the MXU but shrunk to fit the VMEM budget."""
    n128 = _round_up(n, 128)

    def pow2_tile(cap):
        t = 128
        while t * 2 <= cap:
            t *= 2
        return t

    def footprint(tm, tn):
        return (2 * tm * d * 2 + 2 * tn * d * 2        # double-buffered bf16 tiles
                + 2 * tm * 128 * 4 + 2 * tm * 4        # scratch + output
                + 4 * tm * tn * 4 + 2 * tm * d * 4)    # f32 in-kernel temporaries

    tn = pow2_tile(min(512, n128))
    tm = pow2_tile(min(256, n128))
    while footprint(tm, tn) > vmem_budget and tn > 128:
        tn //= 2
    while footprint(tm, tn) > vmem_budget and tm > 128:
        tm //= 2
    # TODO(synk): for very large D a single (128, d) tile can still exceed the
    # budget; chunk the contraction (K) axis with an inner loop in that case.

    n_pad = _round_up(n, max(tm, tn))
    # Keep >= 2 row tiles when N allows so the "parallel" axis can shard across
    # TensorCores (v7x has two per chip).
    if n_pad >= 256 and n_pad // tm < 2:
        tm = n_pad // 2
    return tm, tn, n_pad


def contrastive_loss(features, temperature=0.07):
    """features: (N, D) array.  Returns the scalar float32 NT-Xent loss."""
    n, d = features.shape

    # One-time O(N*d) wrapper-side prologue: L2-normalize rows (eps matches
    # F.normalize) with 1/sqrt(temperature) folded in, then cast to bf16 so the
    # MXU runs at bf16 rate (accumulation stays f32 inside the kernel).
    x = features.astype(jnp.float32)
    ssq = jnp.sum(x * x, axis=1, keepdims=True)
    scale = jax.lax.rsqrt(jnp.maximum(ssq, 1e-24)) * (1.0 / math.sqrt(temperature))
    xn = (x * scale).astype(jnp.bfloat16)

    # VMEM budget with headroom (v7x has only 64 MiB physical per TensorCore).
    try:
        phys_vmem = int(pltpu.get_tpu_info().vmem_capacity_bytes)
    except Exception:
        phys_vmem = 64 * 2**20          # conservative fallback
    vmem_budget = int(phys_vmem * 0.7)

    tm, tn, n_pad = _choose_tiles(n, d, vmem_budget)
    if n_pad != n:
        xn = jnp.pad(xn, ((0, n_pad - n), (0, 0)))   # padded rows are exact zeros

    grid = (n_pad // tm, n_pad // tn)
    kernel = functools.partial(_nt_xent_kernel, n_valid=n, n_pad=n_pad,
                               needs_mask=(n_pad != n))

    est = (2 * tm * d * 2 + 2 * tn * d * 2 + 2 * tm * 128 * 4 + 2 * tm * 4
           + 4 * tm * tn * 4 + 2 * tm * d * 4)
    vmem_limit = int(min(vmem_budget, max(32 * 2**20, 2 * est)))

    # TODO(synk): when the whole bf16 key matrix fits in VMEM (v6e: ~60-80 MiB)
    # a 1-D grid with a resident key operand would cut HBM key traffic to
    # ~2*N*d; a symmetric (j >= i) scheme would halve MXU flops if MXU-bound;
    # pipeline_mode=pl.Buffered(3) on the key spec if profiles show exposed DMA.
    per_row = pl.pallas_call(
        kernel,
        out_shape=jax.ShapeDtypeStruct((n_pad, 1), jnp.float32),
        grid_spec=pltpu.PrefetchScalarGridSpec(
            num_scalar_prefetch=0,
            grid=grid,
            in_specs=[
                pl.BlockSpec((tm, d), lambda i, j: (i, 0)),   # query rows (resident over j)
                pl.BlockSpec((tn, d), lambda i, j: (j, 0)),   # key rows (streamed)
            ],
            out_specs=pl.BlockSpec((tm, 1), lambda i, j: (i, 0)),
            scratch_shapes=[
                pltpu.VMEM((tm, 128), jnp.float32),   # running max (lane-replicated)
                pltpu.VMEM((tm, 128), jnp.float32),   # running sum (lane-replicated)
            ]),
        compiler_params=pltpu.CompilerParams(
            dimension_semantics=("parallel", "arbitrary"),
            vmem_limit_bytes=vmem_limit),
        cost_estimate=pl.CostEstimate(
            flops=2 * n_pad * n_pad * d,
            transcendentals=n_pad * n_pad + 4 * n_pad,
            bytes_accessed=(grid[0] + 1) * n_pad * d * 2 + n_pad * 4),
    )(xn, xn)

    # Padded rows were masked to 0, so sum / true N is exactly the mean.
    return jnp.sum(per_row) / n


def _reference_loss(features, temperature=0.07):
    x = features.astype(jnp.float32)
    norm = jnp.maximum(jnp.linalg.norm(x, axis=1, keepdims=True), 1e-12)
    xn = x / norm
    logits = (xn @ xn.T) / temperature
    lse = jax.scipy.special.logsumexp(logits, axis=1)
    return jnp.mean(lse - jnp.diagonal(logits))


if __name__ == "__main__":
    key = jax.random.PRNGKey(0)
    k1, k2, k3 = jax.random.split(key, 3)

    # bf16 MXU feed is a deliberate accuracy trade -> compare against the f32
    # reference with a loosened relative tolerance.
    def check(feats):
        got = jax.block_until_ready(contrastive_loss(feats, temperature=0.07))
        ref = _reference_loss(feats, temperature=0.07)
        assert jnp.allclose(got, ref, rtol=5e-2, atol=1e-4), (got, ref)

    check(jax.random.normal(k1, (8, 32), dtype=jnp.float32))    # batch of 8, 32-dim
    check(jax.random.normal(k2, (10, 32), dtype=jnp.float32))   # pad-correction path
    check(jax.random.normal(k3, (300, 64), dtype=jnp.float32))  # multi-tile grid (2x2)

    print("KERNEL_OK")
</pallas_src>

<mosaic_0001>
module attributes {stable_mosaic.version = 11 : i64} {
  func.func @_nt_xent_kernel(%arg0: i32, %arg1: i32, %arg2: memref<128x32xbf16, #tpu.memory_space<vmem>>, %arg3: memref<128x32xbf16, #tpu.memory_space<vmem>>, %arg4: memref<128x1xf32, #tpu.memory_space<vmem>>, %arg5: memref<128x128xf32, #tpu.memory_space<vmem>>, %arg6: memref<128x128xf32, #tpu.memory_space<vmem>>) attributes {dimension_semantics = [#tpu.dimension_semantics<parallel>, #tpu.dimension_semantics<arbitrary>], iteration_bounds = array<i64: 1, 1>, scalar_prefetch = 0 : i64, scratch_operands = 2 : i64, tpu.core_type = #tpu.core_type<tc>, window_params = [{transform_indices = @transform_0, window_bounds = array<i64: 128, 32>}, {transform_indices = @transform_1, window_bounds = array<i64: 128, 32>}, {transform_indices = @transform_2, window_bounds = array<i64: 128, 1>}]} {
    %c0_i32 = arith.constant 0 : i32
    %0 = arith.cmpi eq, %arg1, %c0_i32 : i32
    %1 = arith.extui %0 : i1 to i32
    %c0_i32_0 = arith.constant 0 : i32
    %2 = arith.cmpi ne, %1, %c0_i32_0 : i32
    scf.if %2 {
      %cst_16 = arith.constant -1.000000e+30 : f32
      %26 = vector.broadcast %cst_16 : f32 to vector<128x128xf32>
      %c0_17 = arith.constant 0 : index
      %c0_18 = arith.constant 0 : index
      %27 = vector.load %arg5[%c0_17, %c0_18] : memref<128x128xf32, #tpu.memory_space<vmem>>, vector<128x128xf32>
      tpu.vector_store %arg5[%c0_17, %c0_18], %26 {strides = array<i32>} : memref<128x128xf32, #tpu.memory_space<vmem>>, vector<128x128xf32>,
      %cst_19 = arith.constant 0.000000e+00 : f32
      %28 = vector.broadcast %cst_19 : f32 to vector<128x128xf32>
      %c0_20 = arith.constant 0 : index
      %c0_21 = arith.constant 0 : index
      %29 = vector.load %arg6[%c0_20, %c0_21] : memref<128x128xf32, #tpu.memory_space<vmem>>, vector<128x128xf32>
      tpu.vector_store %arg6[%c0_20, %c0_21], %28 {strides = array<i32>} : memref<128x128xf32, #tpu.memory_space<vmem>>, vector<128x128xf32>,
    } else {
    }
    %c0 = arith.constant 0 : index
    %c0_1 = arith.constant 0 : index
    %3 = vector.load %arg2[%c0, %c0_1] : memref<128x32xbf16, #tpu.memory_space<vmem>>, vector<128x32xbf16>
    %c0_2 = arith.constant 0 : index
    %c0_3 = arith.constant 0 : index
    %4 = vector.load %arg3[%c0_2, %c0_3] : memref<128x32xbf16, #tpu.memory_space<vmem>>, vector<128x32xbf16>
    %cst = arith.constant dense<0.000000e+00> : vector<128x128xf32>
    %5 = tpu.matmul %3, %4, %cst {dimension_numbers = #tpu.dot_dimension_numbers<[1], [1], [0], [0], [0, 0, 1, 0], [], []>} : vector<128x32xbf16>, vector<128x32xbf16>, vector<128x128xf32> -> vector<128x128xf32>
    %c0_4 = arith.constant 0 : index
    %c0_5 = arith.constant 0 : index
    %6 = vector.load %arg5[%c0_4, %c0_5] : memref<128x128xf32, #tpu.memory_space<vmem>>, vector<128x128xf32>
    %c0_6 = arith.constant 0 : index
    %c0_7 = arith.constant 0 : index
    %7 = vector.load %arg6[%c0_6, %c0_7] : memref<128x128xf32, #tpu.memory_space<vmem>>, vector<128x128xf32>
    %cst_8 = arith.constant dense<0xFF800000> : vector<128xf32>
    %8 = vector.multi_reduction <maximumf>, %5, %cst_8 [1] : vector<128x128xf32> to vector<128xf32>
    %9 = vector.shape_cast %8 : vector<128xf32> to vector<128x1xf32>
    %10 = vector.broadcast %9 : vector<128x1xf32> to vector<128x128xf32>
    %11 = arith.maximumf %6, %10 : vector<128x128xf32>
    %12 = arith.subf %5, %11 : vector<128x128xf32>
    %13 = math.exp %12 : vector<128x128xf32>
    %14 = arith.subf %6, %11 : vector<128x128xf32>
    %15 = math.exp %14 : vector<128x128xf32>
    %16 = arith.mulf %15, %7 : vector<128x128xf32>
    %cst_9 = arith.constant dense<0.000000e+00> : vector<128xf32>
    %17 = vector.multi_reduction <add>, %13, %cst_9 [1] : vector<128x128xf32> to vector<128xf32>
    %18 = vector.shape_cast %17 : vector<128xf32> to vector<128x1xf32>
    %19 = vector.broadcast %18 : vector<128x1xf32> to vector<128x128xf32>
    %20 = arith.addf %16, %19 : vector<128x128xf32>
    %c0_10 = arith.constant 0 : index
    %c0_11 = arith.constant 0 : index
    %21 = vector.load %arg6[%c0_10, %c0_11] : memref<128x128xf32, #tpu.memory_space<vmem>>, vector<128x128xf32>
    tpu.vector_store %arg6[%c0_10, %c0_11], %20 {strides = array<i32>} : memref<128x128xf32, #tpu.memory_space<vmem>>, vector<128x128xf32>,
    %c0_12 = arith.constant 0 : index
    %c0_13 = arith.constant 0 : index
    %22 = vector.load %arg5[%c0_12, %c0_13] : memref<128x128xf32, #tpu.memory_space<vmem>>, vector<128x128xf32>
    tpu.vector_store %arg5[%c0_12, %c0_13], %11 {strides = array<i32>} : memref<128x128xf32, #tpu.memory_space<vmem>>, vector<128x128xf32>,
    %c0_i32_14 = arith.constant 0 : i32
    %23 = arith.cmpi eq, %arg1, %c0_i32_14 : i32
    %24 = arith.extui %23 : i1 to i32
    %c0_i32_15 = arith.constant 0 : i32
    %25 = arith.cmpi ne, %24, %c0_i32_15 : i32
    scf.if %25 {
      %c0_16 = arith.constant 0 : index
      %c0_17 = arith.constant 0 : index
      %26 = vector.load %arg2[%c0_16, %c0_17] : memref<128x32xbf16, #tpu.memory_space<vmem>>, vector<128x32xbf16>
      %27 = arith.extf %26 : vector<128x32xbf16> to vector<128x32xf32>
      %28 = arith.mulf %27, %27 : vector<128x32xf32>
      %cst_18 = arith.constant dense<0.000000e+00> : vector<128xf32>
      %29 = vector.multi_reduction <add>, %28, %cst_18 [1] : vector<128x32xf32> to vector<128xf32>
      %30 = vector.shape_cast %29 : vector<128xf32> to vector<128x1xf32>
      %c0_19 = arith.constant 0 : index
      %c0_20 = arith.constant 0 : index
      %31 = vector.load %arg5[%c0_19, %c0_20] : memref<128x128xf32, #tpu.memory_space<vmem>>, vector<128x128xf32>
      %c0_21 = arith.constant 0 : index
      %c0_22 = arith.constant 0 : index
      %32 = vector.load %arg6[%c0_21, %c0_22] : memref<128x128xf32, #tpu.memory_space<vmem>>, vector<128x128xf32>
      %cst_23 = arith.constant 0.000000e+00 : f32
      %33 = vector.broadcast %cst_23 : f32 to vector<128x128xf32>
      %34 = arith.subf %33, %31 : vector<128x128xf32>
      %35 = math.exp %34 : vector<128x128xf32>
      %cst_24 = arith.constant 1.200000e+02 : f32
      %36 = vector.broadcast %cst_24 : f32 to vector<128x128xf32>
      %37 = arith.mulf %36, %35 : vector<128x128xf32>
      %38 = arith.subf %32, %37 : vector<128x128xf32>
      %39 = math.log %38 : vector<128x128xf32>
      %40 = arith.addf %31, %39 : vector<128x128xf32>
      %41 = vector.broadcast %30 : vector<128x1xf32> to vector<128x128xf32>
      %42 = arith.subf %40, %41 : vector<128x128xf32>
      %c128_i32 = arith.constant 128 : i32
      %43 = arith.muli %arg0, %c128_i32 : i32
      %44 = tpu.iota {dimensions = array<i32: 0>} : vector<128x1xi32>
      %45 = vector.broadcast %43 : i32 to vector<128x1xi32>
      %46 = arith.addi %45, %44 : vector<128x1xi32>
      %c8_i32 = arith.constant 8 : i32
      %47 = vector.broadcast %c8_i32 : i32 to vector<128x1xi32>
      %48 = arith.cmpi slt, %46, %47 : vector<128x1xi32>
      %cst_25 = arith.constant 0.000000e+00 : f32
      %49 = vector.shape_cast %48 : vector<128x1xi1> to vector<128x1xi1>
      %50 = vector.broadcast %49 : vector<128x1xi1> to vector<128x128xi1>
      %51 = vector.broadcast %cst_25 : f32 to vector<128x128xf32>
      %52 = arith.select %50, %42, %51 : vector<128x128xi1>, vector<128x128xf32>
      %53 = vector.extract_strided_slice %52 {offsets = [0, 0], sizes = [128, 1], strides = [1, 1]} : vector<128x128xf32> to vector<128x1xf32>
      %c0_26 = arith.constant 0 : index
      %c0_27 = arith.constant 0 : index
      %54 = vector.load %arg4[%c0_26, %c0_27] : memref<128x1xf32, #tpu.memory_space<vmem>>, vector<128x1xf32>
      tpu.vector_store %arg4[%c0_26, %c0_27], %53 {strides = array<i32>} : memref<128x1xf32, #tpu.memory_space<vmem>>, vector<128x1xf32>,
    } else {
    }
    return
  }
  func.func @transform_0(%arg0: i32, %arg1: i32) -> (i32, i32) {
    %c0_i32 = arith.constant 0 : i32
    %c0_i32_0 = arith.constant 0 : i32
    return %arg0, %c0_i32 : i32, i32
  }
  func.func @transform_1(%arg0: i32, %arg1: i32) -> (i32, i32) {
    %c0_i32 = arith.constant 0 : i32
    %c0_i32_0 = arith.constant 0 : i32
    return %arg1, %c0_i32 : i32, i32
  }
  func.func @transform_2(%arg0: i32, %arg1: i32) -> (i32, i32) {
    %c0_i32 = arith.constant 0 : i32
    %c0_i32_0 = arith.constant 0 : i32
    return %arg0, %c0_i32 : i32, i32
  }
}

</mosaic_0001>

<llo_original>
// kernel: tpu_custom_call.1
$region0: #{tpu_custom_call.1}
  #allocation0 [shape = 'u32[]', space=smem, size = 0x4, offset = 0x4, fixed_abs, tag = 'smem constant byte address 0x4 - core index']
  #allocation1 [shape = 'u32[144,128]{1,0:T(1,128)}', space=vmem, size = 0x12000, scoped, tag = 'internal scratch']
  #allocation2 [shape = 'f32[128,128]{1,0:T(8,128)}', space=vmem, size = 0x10000, scoped, tag = 'scratch operand']
  #allocation3 [shape = 'f32[128,128]{1,0:T(8,128)}', space=vmem, size = 0x10000, scoped, tag = 'scratch operand']
  %s0 = inlined_call_operand.vmem [shape: bf16[128,32], index: 0, kind: input, shape index: {}]
  %s1 = inlined_call_operand.vmem [shape: bf16[128,32], index: 1, kind: input, shape index: {}]
  %s2 = inlined_call_operand.vmem [shape: f32[128,1], index: 2, kind: output, shape index: {}]
  %s3 = sld [smem:[#allocation0]]
  $region26: #{tpu_custom_call.1} parent=0
    _
  %s5 = ssub.s32 1, %s3
  %s6 = scalar_select 0, %s5, %s3
  // Predicated region
  $region2: #{tpu_custom_call.1} parent=0 // pred_check
    _
  $region3: #{tpu_custom_call.1} parent=0 // pred_check_branch
    %8 = sbr.rel (0) target = $region5
  $region4: #{tpu_custom_call.1} parent=0 // pred_region
    _
  $region5: #{tpu_custom_call.1} parent=0 // pred_fallthru
    _
  // Predicated region
  $region6: #{tpu_custom_call.1} parent=0 // pred_check
    _
  $region7: #{tpu_custom_call.1} parent=0 // pred_check_branch
    %10 = sbr.rel (0) target = $region9
  $region8: #{tpu_custom_call.1} parent=0 // pred_region
    _
  $region9: #{tpu_custom_call.1} parent=0 // pred_fallthru
    _
  %p12 = scmp.eq.s32.totalorder 0, 0
  // Predicated region
  $region10: #{tpu_custom_call.1} parent=0 // pred_check
    %p13 = pneg %p12
  $region11: #{tpu_custom_call.1} parent=0 // pred_check_branch
    %15 = sbr.rel (%p13) target = $region13
  $region12: #{tpu_custom_call.1} parent=0 // pred_region
    %16 = vst [vmem:[#allocation2] sm:$0xff] -1e+30
    %17 = vst [vmem:[#allocation2 + $0x8] sm:$0xff] -1e+30
    %18 = vst [vmem:[#allocation2 + $0x10] sm:$0xff] -1e+30
    %19 = vst [vmem:[#allocation2 + $0x18] sm:$0xff] -1e+30
    %20 = vst [vmem:[#allocation2 + $0x20] sm:$0xff] -1e+30
    %21 = vst [vmem:[#allocation2 + $0x28] sm:$0xff] -1e+30
    %22 = vst [vmem:[#allocation2 + $0x30] sm:$0xff] -1e+30
    %23 = vst [vmem:[#allocation2 + $0x38] sm:$0xff] -1e+30
    %24 = vst [vmem:[#allocation2 + $0x40] sm:$0xff] -1e+30
    %25 = vst [vmem:[#allocation2 + $0x48] sm:$0xff] -1e+30
    %26 = vst [vmem:[#allocation2 + $0x50] sm:$0xff] -1e+30
    %27 = vst [vmem:[#allocation2 + $0x58] sm:$0xff] -1e+30
    %28 = vst [vmem:[#allocation2 + $0x60] sm:$0xff] -1e+30
    %29 = vst [vmem:[#allocation2 + $0x68] sm:$0xff] -1e+30
    %30 = vst [vmem:[#allocation2 + $0x70] sm:$0xff] -1e+30
    %31 = vst [vmem:[#allocation2 + $0x78] sm:$0xff] -1e+30
    %32 = vst [vmem:[#allocation3] sm:$0xff] 0.0
    %33 = vst [vmem:[#allocation3 + $0x8] sm:$0xff] 0.0
    %34 = vst [vmem:[#allocation3 + $0x10] sm:$0xff] 0.0
    %35 = vst [vmem:[#allocation3 + $0x18] sm:$0xff] 0.0
    %36 = vst [vmem:[#allocation3 + $0x20] sm:$0xff] 0.0
    %37 = vst [vmem:[#allocation3 + $0x28] sm:$0xff] 0.0
    %38 = vst [vmem:[#allocation3 + $0x30] sm:$0xff] 0.0
    %39 = vst [vmem:[#allocation3 + $0x38] sm:$0xff] 0.0
    %40 = vst [vmem:[#allocation3 + $0x40] sm:$0xff] 0.0
    %41 = vst [vmem:[#allocation3 + $0x48] sm:$0xff] 0.0
    %42 = vst [vmem:[#allocation3 + $0x50] sm:$0xff] 0.0
    %43 = vst [vmem:[#allocation3 + $0x58] sm:$0xff] 0.0
    %44 = vst [vmem:[#allocation3 + $0x60] sm:$0xff] 0.0
    %45 = vst [vmem:[#allocation3 + $0x68] sm:$0xff] 0.0
    %46 = vst [vmem:[#allocation3 + $0x70] sm:$0xff] 0.0
    %47 = vst [vmem:[#allocation3 + $0x78] sm:$0xff] 0.0
  $region13: #{tpu_custom_call.1} parent=0 // pred_fallthru
    _
  %v48 = vld [vmem:[%s0] sm:$0xf]
  %v49 = vld [vmem:[%s0 + $0x4] sm:$0xf]
  %v50 = vld [vmem:[%s0 + $0x8] sm:$0xf]
  %v51 = vld [vmem:[%s0 + $0xc] sm:$0xf]
  %v52 = vld [vmem:[%s0 + $0x10] sm:$0xf]
  %v53 = vld [vmem:[%s0 + $0x14] sm:$0xf]
  %v54 = vld [vmem:[%s0 + $0x18] sm:$0xf]
  %v55 = vld [vmem:[%s0 + $0x1c] sm:$0xf]
  %v56 = vld [vmem:[%s0 + $0x20] sm:$0xf]
  %v57 = vld [vmem:[%s0 + $0x24] sm:$0xf]
  %v58 = vld [vmem:[%s0 + $0x28] sm:$0xf]
  %v59 = vld [vmem:[%s0 + $0x2c] sm:$0xf]
  %v60 = vld [vmem:[%s0 + $0x30] sm:$0xf]
  %v61 = vld [vmem:[%s0 + $0x34] sm:$0xf]
  %v62 = vld [vmem:[%s0 + $0x38] sm:$0xf]
  %v63 = vld [vmem:[%s0 + $0x3c] sm:$0xf]
  %v64 = vld [vmem:[%s1] sm:$0xf]
  %v65 = vld [vmem:[%s1 + $0x4] sm:$0xf]
  %v66 = vld [vmem:[%s1 + $0x8] sm:$0xf]
  %v67 = vld [vmem:[%s1 + $0xc] sm:$0xf]
  %v68 = vld [vmem:[%s1 + $0x10] sm:$0xf]
  %v69 = vld [vmem:[%s1 + $0x14] sm:$0xf]
  %v70 = vld [vmem:[%s1 + $0x18] sm:$0xf]
  %v71 = vld [vmem:[%s1 + $0x1c] sm:$0xf]
  %v72 = vld [vmem:[%s1 + $0x20] sm:$0xf]
  %v73 = vld [vmem:[%s1 + $0x24] sm:$0xf]
  %v74 = vld [vmem:[%s1 + $0x28] sm:$0xf]
  %v75 = vld [vmem:[%s1 + $0x2c] sm:$0xf]
  %v76 = vld [vmem:[%s1 + $0x30] sm:$0xf]
  %v77 = vld [vmem:[%s1 + $0x34] sm:$0xf]
  %v78 = vld [vmem:[%s1 + $0x38] sm:$0xf]
  %v79 = vld [vmem:[%s1 + $0x3c] sm:$0xf]
  %v96 = vunpack.c.l.b16 %v48
  %v97 = vunpack.c.l.b16 %v49
  %v98 = vunpack.c.l.b16 %v50
  %v99 = vunpack.c.l.b16 %v51
  %v100 = vunpack.c.l.b16 %v52
  %v101 = vunpack.c.l.b16 %v53
  %v102 = vunpack.c.l.b16 %v54
  %v103 = vunpack.c.l.b16 %v55
  %v104 = vunpack.c.l.b16 %v56
  %v105 = vunpack.c.l.b16 %v57
  %v106 = vunpack.c.l.b16 %v58
  %v107 = vunpack.c.l.b16 %v59
  %v108 = vunpack.c.l.b16 %v60
  %v109 = vunpack.c.l.b16 %v61
  %v110 = vunpack.c.l.b16 %v62
  %v111 = vunpack.c.l.b16 %v63
  %v112 = vpack.c.b16 %v97, %v96
  %v113 = vpack.c.b16 %v99, %v98
  %v114 = vpack.c.b16 %v101, %v100
  %v115 = vpack.c.b16 %v103, %v102
  %v116 = vpack.c.b16 %v105, %v104
  %v117 = vpack.c.b16 %v107, %v106
  %v118 = vpack.c.b16 %v109, %v108
  %v119 = vpack.c.b16 %v111, %v110
  %v136 = vunpack.c.l.b16 %v64
  %v137 = vunpack.c.l.b16 %v65
  %v138 = vunpack.c.l.b16 %v66
  %v139 = vunpack.c.l.b16 %v67
  %v140 = vunpack.c.l.b16 %v68
  %v141 = vunpack.c.l.b16 %v69
  %v142 = vunpack.c.l.b16 %v70
  %v143 = vunpack.c.l.b16 %v71
  %v144 = vunpack.c.l.b16 %v72
  %v145 = vunpack.c.l.b16 %v73
  %v146 = vunpack.c.l.b16 %v74
  %v147 = vunpack.c.l.b16 %v75
  %v148 = vunpack.c.l.b16 %v76
  %v149 = vunpack.c.l.b16 %v77
  %v150 = vunpack.c.l.b16 %v78
  %v151 = vunpack.c.l.b16 %v79
  %v152 = vpack.c.b16 %v137, %v136
  %v153 = vpack.c.b16 %v139, %v138
  %v154 = vpack.c.b16 %v141, %v140
  %v155 = vpack.c.b16 %v143, %v142
  %v156 = vpack.c.b16 %v145, %v144
  %v157 = vpack.c.b16 %v147, %v146
  %v158 = vpack.c.b16 %v149, %v148
  %v159 = vpack.c.b16 %v151, %v150
  %vm160 = vcmask 261120
  %v162 = vsel %vm160, %v112, 0
  %v165 = vsel %vm160, %v113, 0
  %v168 = vsel %vm160, %v114, 0
  %v171 = vsel %vm160, %v115, 0
  %v174 = vsel %vm160, %v116, 0
  %v177 = vsel %vm160, %v117, 0
  %v180 = vsel %vm160, %v118, 0
  %v183 = vsel %vm160, %v119, 0
  %v186 = vsel %vm160, %v152, 0
  %v189 = vsel %vm160, %v153, 0
  %v192 = vsel %vm160, %v154, 0
  %v195 = vsel %vm160, %v155, 0
  %v198 = vsel %vm160, %v156, 0
  %v201 = vsel %vm160, %v157, 0
  %v204 = vsel %vm160, %v158, 0
  %v207 = vsel %vm160, %v159, 0
  %209 = vmatprep.subr.bf16.mxu0 0
  %210 = vmatpush1.bf16.xpose.msra.mxu0 %v207
  %211 = vmatprep.subr.bf16.mxu0 0
  %212 = vmatpush1.bf16.xpose.msra.mxu0 %v204
  %213 = vmatprep.subr.bf16.mxu0 0
  %214 = vmatpush1.bf16.xpose.msra.mxu0 %v201
  %215 = vmatprep.subr.bf16.mxu0 0
  %216 = vmatpush1.bf16.xpose.msra.mxu0 %v198
  %217 = vmatprep.subr.bf16.mxu0 0
  %218 = vmatpush1.bf16.xpose.msra.mxu0 %v195
  %219 = vmatprep.subr.bf16.mxu0 0
  %220 = vmatpush1.bf16.xpose.msra.mxu0 %v192
  %221 = vmatprep.subr.bf16.mxu0 0
  %222 = vmatpush1.bf16.xpose.msra.mxu0 %v189
  %223 = vmatprep.subr.bf16.mxu0 0
  %224 = vmatpush1.bf16.xpose.msra.mxu0 %v186
  %225 = vmatprep.subr.bf16.mxu0 0
  %226 = vmatpush2.bf16.xpose.msra.mxu0 0
  %227 = vmatprep.subr.bf16.mxu0 0
  %228 = vmatpush2.bf16.xpose.msra.mxu0 0
  %229 = vmatprep.subr.bf16.mxu0 0
  %230 = vmatpush2.bf16.xpose.msra.mxu0 0
  %231 = vmatprep.subr.bf16.mxu0 0
  %232 = vmatpush2.bf16.xpose.msra.mxu0 0
  %233 = vmatprep.subr.bf16.mxu0 0
  %234 = vmatpush2.bf16.xpose.msra.mxu0 0
  %235 = vmatprep.subr.bf16.mxu0 0
  %236 = vmatpush2.bf16.xpose.msra.mxu0 0
  %237 = vmatprep.subr.bf16.mxu0 0
  %238 = vmatpush2.bf16.xpose.msra.mxu0 0
  %239 = vmatprep.subr.bf16.mxu0 0
  %240 = vmatpush2.bf16.xpose.msra.mxu0 0
  %241 = vmatprep.mubr.bf16.mxu0 0
  %242 = vmatmul.mubr.bf16.gmra.mxu0 %v162
  %v243 = vpop.f32.mrf.mxu0
  %v244 = vadd.f32 0.0, %v243
  %v245 = vpop.f32.mrf.mxu0
  %v246 = vpop.f32.mrf.mxu0
  %v247 = vadd.f32 0.0, %v246
  %v248 = vpop.f32.mrf.mxu0
  %249 = vmatprep.mubr.bf16.mxu0 0
  %250 = vmatmul.mubr.bf16.gmra.mxu0 %v165
  %v251 = vpop.f32.mrf.mxu0
  %v252 = vadd.f32 0.0, %v251
  %v253 = vpop.f32.mrf.mxu0
  %v254 = vpop.f32.mrf.mxu0
  %v255 = vadd.f32 0.0, %v254
  %v256 = vpop.f32.mrf.mxu0
  %257 = vmatprep.mubr.bf16.mxu0 0
  %258 = vmatmul.mubr.bf16.gmra.mxu0 %v168
  %v259 = vpop.f32.mrf.mxu0
  %v260 = vadd.f32 0.0, %v259
  %v261 = vpop.f32.mrf.mxu0
  %v262 = vpop.f32.mrf.mxu0
  %v263 = vadd.f32 0.0, %v262
  %v264 = vpop.f32.mrf.mxu0
  %265 = vmatprep.mubr.bf16.mxu0 0
  %266 = vmatmul.mubr.bf16.gmra.mxu0 %v171
  %v267 = vpop.f32.mrf.mxu0
  %v268 = vadd.f32 0.0, %v267
  %v269 = vpop.f32.mrf.mxu0
  %v270 = vpop.f32.mrf.mxu0
  %v271 = vadd.f32 0.0, %v270
  %v272 = vpop.f32.mrf.mxu0
  %273 = vmatprep.mubr.bf16.mxu0 0
  %274 = vmatmul.mubr.bf16.gmra.mxu0 %v174
  %v275 = vpop.f32.mrf.mxu0
  %v276 = vadd.f32 0.0, %v275
  %v277 = vpop.f32.mrf.mxu0
  %v278 = vpop.f32.mrf.mxu0
  %v279 = vadd.f32 0.0, %v278
  %v280 = vpop.f32.mrf.mxu0
  %281 = vmatprep.mubr.bf16.mxu0 0
  %282 = vmatmul.mubr.bf16.gmra.mxu0 %v177
  %v283 = vpop.f32.mrf.mxu0
  %v284 = vadd.f32 0.0, %v283
  %v285 = vpop.f32.mrf.mxu0
  %v286 = vpop.f32.mrf.mxu0
  %v287 = vadd.f32 0.0, %v286
  %v288 = vpop.f32.mrf.mxu0
  %289 = vmatprep.mubr.bf16.mxu0 0
  %290 = vmatmul.mubr.bf16.gmra.mxu0 %v180
  %v291 = vpop.f32.mrf.mxu0
  %v292 = vadd.f32 0.0, %v291
  %v293 = vpop.f32.mrf.mxu0
  %v294 = vpop.f32.mrf.mxu0
  %v295 = vadd.f32 0.0, %v294
  %v296 = vpop.f32.mrf.mxu0
  %297 = vmatprep.mubr.bf16.mxu0 0
  %298 = vmatmul.mubr.bf16.gmra.mxu0 %v183
  %v299 = vpop.f32.mrf.mxu0
  %v300 = vadd.f32 0.0, %v299
  %v301 = vpop.f32.mrf.mxu0
  %v302 = vpop.f32.mrf.mxu0
  %v303 = vadd.f32 0.0, %v302
  %v304 = vpop.f32.mrf.mxu0
  %305 = vdwg.mxu0
  %v306 = vld [vmem:[#allocation2] sm:$0xff]
  %v307 = vld [vmem:[#allocation2 + $0x8] sm:$0xff]
  %v308 = vld [vmem:[#allocation2 + $0x10] sm:$0xff]
  %v309 = vld [vmem:[#allocation2 + $0x18] sm:$0xff]
  %v310 = vld [vmem:[#allocation2 + $0x20] sm:$0xff]
  %v311 = vld [vmem:[#allocation2 + $0x28] sm:$0xff]
  %v312 = vld [vmem:[#allocation2 + $0x30] sm:$0xff]
  %v313 = vld [vmem:[#allocation2 + $0x38] sm:$0xff]
  %v314 = vld [vmem:[#allocation2 + $0x40] sm:$0xff]
  %v315 = vld [vmem:[#allocation2 + $0x48] sm:$0xff]
  %v316 = vld [vmem:[#allocation2 + $0x50] sm:$0xff]
  %v317 = vld [vmem:[#allocation2 + $0x58] sm:$0xff]
  %v318 = vld [vmem:[#allocation2 + $0x60] sm:$0xff]
  %v319 = vld [vmem:[#allocation2 + $0x68] sm:$0xff]
  %v320 = vld [vmem:[#allocation2 + $0x70] sm:$0xff]
  %v321 = vld [vmem:[#allocation2 + $0x78] sm:$0xff]
  %v322 = vld [vmem:[#allocation3] sm:$0xff]
  %v323 = vld [vmem:[#allocation3 + $0x8] sm:$0xff]
  %v324 = vld [vmem:[#allocation3 + $0x10] sm:$0xff]
  %v325 = vld [vmem:[#allocation3 + $0x18] sm:$0xff]
  %v326 = vld [vmem:[#allocation3 + $0x20] sm:$0xff]
  %v327 = vld [vmem:[#allocation3 + $0x28] sm:$0xff]
  %v328 = vld [vmem:[#allocation3 + $0x30] sm:$0xff]
  %v329 = vld [vmem:[#allocation3 + $0x38] sm:$0xff]
  %v330 = vld [vmem:[#allocation3 + $0x40] sm:$0xff]
  %v331 = vld [vmem:[#allocation3 + $0x48] sm:$0xff]
  %v332 = vld [vmem:[#allocation3 + $0x50] sm:$0xff]
  %v333 = vld [vmem:[#allocation3 + $0x58] sm:$0xff]
  %v334 = vld [vmem:[#allocation3 + $0x60] sm:$0xff]
  %v335 = vld [vmem:[#allocation3 + $0x68] sm:$0xff]
  %v336 = vld [vmem:[#allocation3 + $0x70] sm:$0xff]
  %v337 = vld [vmem:[#allocation3 + $0x78] sm:$0xff]
  %338 = vmax.xlane.f32.xlu0 %v244
  %v339 = vpop.xlane.xlu0 %338
  %340 = vmax.xlane.f32.xlu0 %v247
  %v341 = vpop.xlane.xlu0 %340
  %342 = vmax.xlane.f32.xlu0 %v252
  %v343 = vpop.xlane.xlu0 %342
  %344 = vmax.xlane.f32.xlu0 %v255
  %v345 = vpop.xlane.xlu0 %344
  %346 = vmax.xlane.f32.xlu0 %v260
  %v347 = vpop.xlane.xlu0 %346
  %348 = vmax.xlane.f32.xlu0 %v263
  %v349 = vpop.xlane.xlu0 %348
  %350 = vmax.xlane.f32.xlu0 %v268
  %v351 = vpop.xlane.xlu0 %350
  %352 = vmax.xlane.f32.xlu0 %v271
  %v353 = vpop.xlane.xlu0 %352
  %354 = vmax.xlane.f32.xlu0 %v276
  %v355 = vpop.xlane.xlu0 %354
  %356 = vmax.xlane.f32.xlu0 %v279
  %v357 = vpop.xlane.xlu0 %356
  %358 = vmax.xlane.f32.xlu0 %v284
  %v359 = vpop.xlane.xlu0 %358
  %360 = vmax.xlane.f32.xlu0 %v287
  %v361 = vpop.xlane.xlu0 %360
  %362 = vmax.xlane.f32.xlu0 %v292
  %v363 = vpop.xlane.xlu0 %362
  %364 = vmax.xlane.f32.xlu0 %v295
  %v365 = vpop.xlane.xlu0 %364
  %366 = vmax.xlane.f32.xlu0 %v300
  %v367 = vpop.xlane.xlu0 %366
  %368 = vmax.xlane.f32.xlu0 %v303
  %v369 = vpop.xlane.xlu0 %368
  %v370 = vmax.f32 %v306, %v339
  %v371 = vmax.f32 %v307, %v341
  %v372 = vmax.f32 %v308, %v343
  %v373 = vmax.f32 %v309, %v345
  %v374 = vmax.f32 %v310, %v347
  %v375 = vmax.f32 %v311, %v349
  %v376 = vmax.f32 %v312, %v351
  %v377 = vmax.f32 %v313, %v353
  %v378 = vmax.f32 %v314, %v355
  %v379 = vmax.f32 %v315, %v357
  %v380 = vmax.f32 %v316, %v359
  %v381 = vmax.f32 %v317, %v361
  %v382 = vmax.f32 %v318, %v363
  %v383 = vmax.f32 %v319, %v365
  %v384 = vmax.f32 %v320, %v367
  %v385 = vmax.f32 %v321, %v369
  %v386 = vsub.f32 %v244, %v370
  %v387 = vsub.f32 %v247, %v371
  %v388 = vsub.f32 %v252, %v372
  %v389 = vsub.f32 %v255, %v373
  %v390 = vsub.f32 %v260, %v374
  %v391 = vsub.f32 %v263, %v375
  %v392 = vsub.f32 %v268, %v376
  %v393 = vsub.f32 %v271, %v377
  %v394 = vsub.f32 %v276, %v378
  %v395 = vsub.f32 %v279, %v379
  %v396 = vsub.f32 %v284, %v380
  %v397 = vsub.f32 %v287, %v381
  %v398 = vsub.f32 %v292, %v382
  %v399 = vsub.f32 %v295, %v383
  %v400 = vsub.f32 %v300, %v384
  %v401 = vsub.f32 %v303, %v385
  %v402 = vmul.f32 %v386, 1.442695
  %v403 = vpow.pop %v402
  %v404 = vmul.f32 %v387, 1.442695
  %v405 = vpow.pop %v404
  %v406 = vmul.f32 %v388, 1.442695
  %v407 = vpow.pop %v406
  %v408 = vmul.f32 %v389, 1.442695
  %v409 = vpow.pop %v408
  %v410 = vmul.f32 %v390, 1.442695
  %v411 = vpow.pop %v410
  %v412 = vmul.f32 %v391, 1.442695
  %v413 = vpow.pop %v412
  %v414 = vmul.f32 %v392, 1.442695
  %v415 = vpow.pop %v414
  %v416 = vmul.f32 %v393, 1.442695
  %v417 = vpow.pop %v416
  %v418 = vmul.f32 %v394, 1.442695
  %v419 = vpow.pop %v418
  %v420 = vmul.f32 %v395, 1.442695
  %v421 = vpow.pop %v420
  %v422 = vmul.f32 %v396, 1.442695
  %v423 = vpow.pop %v422
  %v424 = vmul.f32 %v397, 1.442695
  %v425 = vpow.pop %v424
  %v426 = vmul.f32 %v398, 1.442695
  %v427 = vpow.pop %v426
  %v428 = vmul.f32 %v399, 1.442695
  %v429 = vpow.pop %v428
  %v430 = vmul.f32 %v400, 1.442695
  %v431 = vpow.pop %v430
  %v432 = vmul.f32 %v401, 1.442695
  %v433 = vpow.pop %v432
  %v434 = vsub.f32 %v306, %v370
  %v435 = vsub.f32 %v307, %v371
  %v436 = vsub.f32 %v308, %v372
  %v437 = vsub.f32 %v309, %v373
  %v438 = vsub.f32 %v310, %v374
  %v439 = vsub.f32 %v311, %v375
  %v440 = vsub.f32 %v312, %v376
  %v441 = vsub.f32 %v313, %v377
  %v442 = vsub.f32 %v314, %v378
  %v443 = vsub.f32 %v315, %v379
  %v444 = vsub.f32 %v316, %v380
  %v445 = vsub.f32 %v317, %v381
  %v446 = vsub.f32 %v318, %v382
  %v447 = vsub.f32 %v319, %v383
  %v448 = vsub.f32 %v320, %v384
  %v449 = vsub.f32 %v321, %v385
  %v450 = vmul.f32 %v434, 1.442695
  %v451 = vpow.pop %v450
  %v452 = vmul.f32 %v435, 1.442695
  %v453 = vpow.pop %v452
  %v454 = vmul.f32 %v436, 1.442695
  %v455 = vpow.pop %v454
  %v456 = vmul.f32 %v437, 1.442695
  %v457 = vpow.pop %v456
  %v458 = vmul.f32 %v438, 1.442695
  %v459 = vpow.pop %v458
  %v460 = vmul.f32 %v439, 1.442695
  %v461 = vpow.pop %v460
  %v462 = vmul.f32 %v440, 1.442695
  %v463 = vpow.pop %v462
  %v464 = vmul.f32 %v441, 1.442695
  %v465 = vpow.pop %v464
  %v466 = vmul.f32 %v442, 1.442695
  %v467 = vpow.pop %v466
  %v468 = vmul.f32 %v443, 1.442695
  %v469 = vpow.pop %v468
  %v470 = vmul.f32 %v444, 1.442695
  %v471 = vpow.pop %v470
  %v472 = vmul.f32 %v445, 1.442695
  %v473 = vpow.pop %v472
  %v474 = vmul.f32 %v446, 1.442695
  %v475 = vpow.pop %v474
  %v476 = vmul.f32 %v447, 1.442695
  %v477 = vpow.pop %v476
  %v478 = vmul.f32 %v448, 1.442695
  %v479 = vpow.pop %v478
  %v480 = vmul.f32 %v449, 1.442695
  %v481 = vpow.pop %v480
  %v482 = vmul.f32 %v451, %v322
  %v483 = vmul.f32 %v453, %v323
  %v484 = vmul.f32 %v455, %v324
  %v485 = vmul.f32 %v457, %v325
  %v486 = vmul.f32 %v459, %v326
  %v487 = vmul.f32 %v461, %v327
  %v488 = vmul.f32 %v463, %v328
  %v489 = vmul.f32 %v465, %v329
  %v490 = vmul.f32 %v467, %v330
  %v491 = vmul.f32 %v469, %v331
  %v492 = vmul.f32 %v471, %v332
  %v493 = vmul.f32 %v473, %v333
  %v494 = vmul.f32 %v475, %v334
  %v495 = vmul.f32 %v477, %v335
  %v496 = vmul.f32 %v479, %v336
  %v497 = vmul.f32 %v481, %v337
  %498 = vadd.xlane.f32.xlu0 %v403
  %v499 = vpop.xlane.xlu0 %498
  %500 = vadd.xlane.f32.xlu0 %v405
  %v501 = vpop.xlane.xlu0 %500
  %502 = vadd.xlane.f32.xlu0 %v407
  %v503 = vpop.xlane.xlu0 %502
  %504 = vadd.xlane.f32.xlu0 %v409
  %v505 = vpop.xlane.xlu0 %504
  %506 = vadd.xlane.f32.xlu0 %v411
  %v507 = vpop.xlane.xlu0 %506
  %508 = vadd.xlane.f32.xlu0 %v413
  %v509 = vpop.xlane.xlu0 %508
  %510 = vadd.xlane.f32.xlu0 %v415
  %v511 = vpop.xlane.xlu0 %510
  %512 = vadd.xlane.f32.xlu0 %v417
  %v513 = vpop.xlane.xlu0 %512
  %514 = vadd.xlane.f32.xlu0 %v419
  %v515 = vpop.xlane.xlu0 %514
  %516 = vadd.xlane.f32.xlu0 %v421
  %v517 = vpop.xlane.xlu0 %516
  %518 = vadd.xlane.f32.xlu0 %v423
  %v519 = vpop.xlane.xlu0 %518
  %520 = vadd.xlane.f32.xlu0 %v425
  %v521 = vpop.xlane.xlu0 %520
  %522 = vadd.xlane.f32.xlu0 %v427
  %v523 = vpop.xlane.xlu0 %522
  %524 = vadd.xlane.f32.xlu0 %v429
  %v525 = vpop.xlane.xlu0 %524
  %526 = vadd.xlane.f32.xlu0 %v431
  %v527 = vpop.xlane.xlu0 %526
  %528 = vadd.xlane.f32.xlu0 %v433
  %v529 = vpop.xlane.xlu0 %528
  %v530 = vadd.f32 %v482, %v499
  %v531 = vadd.f32 %v483, %v501
  %v532 = vadd.f32 %v484, %v503
  %v533 = vadd.f32 %v485, %v505
  %v534 = vadd.f32 %v486, %v507
  %v535 = vadd.f32 %v487, %v509
  %v536 = vadd.f32 %v488, %v511
  %v537 = vadd.f32 %v489, %v513
  %v538 = vadd.f32 %v490, %v515
  %v539 = vadd.f32 %v491, %v517
  %v540 = vadd.f32 %v492, %v519
  %v541 = vadd.f32 %v493, %v521
  %v542 = vadd.f32 %v494, %v523
  %v543 = vadd.f32 %v495, %v525
  %v544 = vadd.f32 %v496, %v527
  %v545 = vadd.f32 %v497, %v529
  %546 = vst [vmem:[#allocation3] sm:$0xff] %v530
  %547 = vst [vmem:[#allocation3 + $0x8] sm:$0xff] %v531
  %548 = vst [vmem:[#allocation3 + $0x10] sm:$0xff] %v532
  %549 = vst [vmem:[#allocation3 + $0x18] sm:$0xff] %v533
  %550 = vst [vmem:[#allocation3 + $0x20] sm:$0xff] %v534
  %551 = vst [vmem:[#allocation3 + $0x28] sm:$0xff] %v535
  %552 = vst [vmem:[#allocation3 + $0x30] sm:$0xff] %v536
  %553 = vst [vmem:[#allocation3 + $0x38] sm:$0xff] %v537
  %554 = vst [vmem:[#allocation3 + $0x40] sm:$0xff] %v538
  %555 = vst [vmem:[#allocation3 + $0x48] sm:$0xff] %v539
  %556 = vst [vmem:[#allocation3 + $0x50] sm:$0xff] %v540
  %557 = vst [vmem:[#allocation3 + $0x58] sm:$0xff] %v541
  %558 = vst [vmem:[#allocation3 + $0x60] sm:$0xff] %v542
  %559 = vst [vmem:[#allocation3 + $0x68] sm:$0xff] %v543
  %560 = vst [vmem:[#allocation3 + $0x70] sm:$0xff] %v544
  %561 = vst [vmem:[#allocation3 + $0x78] sm:$0xff] %v545
  %562 = vst [vmem:[#allocation2] sm:$0xff] %v370
  %563 = vst [vmem:[#allocation2 + $0x8] sm:$0xff] %v371
  %564 = vst [vmem:[#allocation2 + $0x10] sm:$0xff] %v372
  %565 = vst [vmem:[#allocation2 + $0x18] sm:$0xff] %v373
  %566 = vst [vmem:[#allocation2 + $0x20] sm:$0xff] %v374
  %567 = vst [vmem:[#allocation2 + $0x28] sm:$0xff] %v375
  %568 = vst [vmem:[#allocation2 + $0x30] sm:$0xff] %v376
  %569 = vst [vmem:[#allocation2 + $0x38] sm:$0xff] %v377
  %570 = vst [vmem:[#allocation2 + $0x40] sm:$0xff] %v378
  %571 = vst [vmem:[#allocation2 + $0x48] sm:$0xff] %v379
  %572 = vst [vmem:[#allocation2 + $0x50] sm:$0xff] %v380
  %573 = vst [vmem:[#allocation2 + $0x58] sm:$0xff] %v381
  %574 = vst [vmem:[#allocation2 + $0x60] sm:$0xff] %v382
  %575 = vst [vmem:[#allocation2 + $0x68] sm:$0xff] %v383
  %576 = vst [vmem:[#allocation2 + $0x70] sm:$0xff] %v384
  %577 = vst [vmem:[#allocation2 + $0x78] sm:$0xff] %v385
  // Predicated region
  $region14: #{tpu_custom_call.1} parent=0 // pred_check
    %p578 = pneg %p12
  $region15: #{tpu_custom_call.1} parent=0 // pred_check_branch
    %580 = sbr.rel (%p578) target = $region17
  $region16: #{tpu_custom_call.1} parent=0 // pred_region
    %v581 = vld [vmem:[%s0] sm:$0xf]
    %v582 = vld [vmem:[%s0 + $0x4] sm:$0xf]
    %v583 = vld [vmem:[%s0 + $0x8] sm:$0xf]
    %v584 = vld [vmem:[%s0 + $0xc] sm:$0xf]
    %v585 = vld [vmem:[%s0 + $0x10] sm:$0xf]
    %v586 = vld [vmem:[%s0 + $0x14] sm:$0xf]
    %v587 = vld [vmem:[%s0 + $0x18] sm:$0xf]
    %v588 = vld [vmem:[%s0 + $0x1c] sm:$0xf]
    %v589 = vld [vmem:[%s0 + $0x20] sm:$0xf]
    %v590 = vld [vmem:[%s0 + $0x24] sm:$0xf]
    %v591 = vld [vmem:[%s0 + $0x28] sm:$0xf]
    %v592 = vld [vmem:[%s0 + $0x2c] sm:$0xf]
    %v593 = vld [vmem:[%s0 + $0x30] sm:$0xf]
    %v594 = vld [vmem:[%s0 + $0x34] sm:$0xf]
    %v595 = vld [vmem:[%s0 + $0x38] sm:$0xf]
    %v596 = vld [vmem:[%s0 + $0x3c] sm:$0xf]
    %v597 = vunpack.c.l.bf16 %v581
    %v598 = vunpack.c.l.bf16 %v582
    %v599 = vunpack.c.l.bf16 %v583
    %v600 = vunpack.c.l.bf16 %v584
    %v601 = vunpack.c.l.bf16 %v585
    %v602 = vunpack.c.l.bf16 %v586
    %v603 = vunpack.c.l.bf16 %v587
    %v604 = vunpack.c.l.bf16 %v588
    %v605 = vunpack.c.l.bf16 %v589
    %v606 = vunpack.c.l.bf16 %v590
    %v607 = vunpack.c.l.bf16 %v591
    %v608 = vunpack.c.l.bf16 %v592
    %v609 = vunpack.c.l.bf16 %v593
    %v610 = vunpack.c.l.bf16 %v594
    %v611 = vunpack.c.l.bf16 %v595
    %v612 = vunpack.c.l.bf16 %v596
    %v613 = vmul.f32 %v597, %v597
    %v614 = vmul.f32 %v598, %v598
    %v615 = vmul.f32 %v599, %v599
    %v616 = vmul.f32 %v600, %v600
    %v617 = vmul.f32 %v601, %v601
    %v618 = vmul.f32 %v602, %v602
    %v619 = vmul.f32 %v603, %v603
    %v620 = vmul.f32 %v604, %v604
    %v621 = vmul.f32 %v605, %v605
    %v622 = vmul.f32 %v606, %v606
    %v623 = vmul.f32 %v607, %v607
    %v624 = vmul.f32 %v608, %v608
    %v625 = vmul.f32 %v609, %v609
    %v626 = vmul.f32 %v610, %v610
    %v627 = vmul.f32 %v611, %v611
    %v628 = vmul.f32 %v612, %v612
    %v629 = vsel %vm160, %v613, 0.0
    %630 = vadd.xlane.f32.xlu0 %v629
    %v631 = vpop.xlane.xlu0 %630
    %v632 = vsel %vm160, %v614, 0.0
    %633 = vadd.xlane.f32.xlu0 %v632
    %v634 = vpop.xlane.xlu0 %633
    %v635 = vsel %vm160, %v615, 0.0
    %636 = vadd.xlane.f32.xlu0 %v635
    %v637 = vpop.xlane.xlu0 %636
    %v638 = vsel %vm160, %v616, 0.0
    %639 = vadd.xlane.f32.xlu0 %v638
    %v640 = vpop.xlane.xlu0 %639
    %v641 = vsel %vm160, %v617, 0.0
    %642 = vadd.xlane.f32.xlu0 %v641
    %v643 = vpop.xlane.xlu0 %642
    %v644 = vsel %vm160, %v618, 0.0
    %645 = vadd.xlane.f32.xlu0 %v644
    %v646 = vpop.xlane.xlu0 %645
    %v647 = vsel %vm160, %v619, 0.0
    %648 = vadd.xlane.f32.xlu0 %v647
    %v649 = vpop.xlane.xlu0 %648
    %v650 = vsel %vm160, %v620, 0.0
    %651 = vadd.xlane.f32.xlu0 %v650
    %v652 = vpop.xlane.xlu0 %651
    %v653 = vsel %vm160, %v621, 0.0
    %654 = vadd.xlane.f32.xlu0 %v653
    %v655 = vpop.xlane.xlu0 %654
    %v656 = vsel %vm160, %v622, 0.0
    %657 = vadd.xlane.f32.xlu0 %v656
    %v658 = vpop.xlane.xlu0 %657
    %v659 = vsel %vm160, %v623, 0.0
    %660 = vadd.xlane.f32.xlu0 %v659
    %v661 = vpop.xlane.xlu0 %660
    %v662 = vsel %vm160, %v624, 0.0
    %663 = vadd.xlane.f32.xlu0 %v662
    %v664 = vpop.xlane.xlu0 %663
    %v665 = vsel %vm160, %v625, 0.0
    %666 = vadd.xlane.f32.xlu0 %v665
    %v667 = vpop.xlane.xlu0 %666
    %v668 = vsel %vm160, %v626, 0.0
    %669 = vadd.xlane.f32.xlu0 %v668
    %v670 = vpop.xlane.xlu0 %669
    %v671 = vsel %vm160, %v627, 0.0
    %672 = vadd.xlane.f32.xlu0 %v671
    %v673 = vpop.xlane.xlu0 %672
    %v674 = vsel %vm160, %v628, 0.0
    %675 = vadd.xlane.f32.xlu0 %v674
    %v676 = vpop.xlane.xlu0 %675
    %v677 = vld [vmem:[#allocation2] sm:$0xff]
    %v678 = vld [vmem:[#allocation2 + $0x8] sm:$0xff]
    %v679 = vld [vmem:[#allocation2 + $0x10] sm:$0xff]
    %v680 = vld [vmem:[#allocation2 + $0x18] sm:$0xff]
    %v681 = vld [vmem:[#allocation2 + $0x20] sm:$0xff]
    %v682 = vld [vmem:[#allocation2 + $0x28] sm:$0xff]
    %v683 = vld [vmem:[#allocation2 + $0x30] sm:$0xff]
    %v684 = vld [vmem:[#allocation2 + $0x38] sm:$0xff]
    %v685 = vld [vmem:[#allocation2 + $0x40] sm:$0xff]
    %v686 = vld [vmem:[#allocation2 + $0x48] sm:$0xff]
    %v687 = vld [vmem:[#allocation2 + $0x50] sm:$0xff]
    %v688 = vld [vmem:[#allocation2 + $0x58] sm:$0xff]
    %v689 = vld [vmem:[#allocation2 + $0x60] sm:$0xff]
    %v690 = vld [vmem:[#allocation2 + $0x68] sm:$0xff]
    %v691 = vld [vmem:[#allocation2 + $0x70] sm:$0xff]
    %v692 = vld [vmem:[#allocation2 + $0x78] sm:$0xff]
    %v693 = vld [vmem:[#allocation3] sm:$0xff]
    %v694 = vld [vmem:[#allocation3 + $0x8] sm:$0xff]
    %v695 = vld [vmem:[#allocation3 + $0x10] sm:$0xff]
    %v696 = vld [vmem:[#allocation3 + $0x18] sm:$0xff]
    %v697 = vld [vmem:[#allocation3 + $0x20] sm:$0xff]
    %v698 = vld [vmem:[#allocation3 + $0x28] sm:$0xff]
    %v699 = vld [vmem:[#allocation3 + $0x30] sm:$0xff]
    %v700 = vld [vmem:[#allocation3 + $0x38] sm:$0xff]
    %v701 = vld [vmem:[#allocation3 + $0x40] sm:$0xff]
    %v702 = vld [vmem:[#allocation3 + $0x48] sm:$0xff]
    %v703 = vld [vmem:[#allocation3 + $0x50] sm:$0xff]
    %v704 = vld [vmem:[#allocation3 + $0x58] sm:$0xff]
    %v705 = vld [vmem:[#allocation3 + $0x60] sm:$0xff]
    %v706 = vld [vmem:[#allocation3 + $0x68] sm:$0xff]
    %v707 = vld [vmem:[#allocation3 + $0x70] sm:$0xff]
    %v708 = vld [vmem:[#allocation3 + $0x78] sm:$0xff]
    %v709 = vsub.f32 0.0, %v677
    %v710 = vsub.f32 0.0, %v678
    %v711 = vsub.f32 0.0, %v679
    %v712 = vsub.f32 0.0, %v680
    %v713 = vsub.f32 0.0, %v681
    %v714 = vsub.f32 0.0, %v682
    %v715 = vsub.f32 0.0, %v683
    %v716 = vsub.f32 0.0, %v684
    %v717 = vsub.f32 0.0, %v685
    %v718 = vsub.f32 0.0, %v686
    %v719 = vsub.f32 0.0, %v687
    %v720 = vsub.f32 0.0, %v688
    %v721 = vsub.f32 0.0, %v689
    %v722 = vsub.f32 0.0, %v690
    %v723 = vsub.f32 0.0, %v691
    %v724 = vsub.f32 0.0, %v692
    %v725 = vmul.f32 %v709, 1.442695
    %v726 = vpow.pop %v725
    %v727 = vmul.f32 %v710, 1.442695
    %v728 = vpow.pop %v727
    %v729 = vmul.f32 %v711, 1.442695
    %v730 = vpow.pop %v729
    %v731 = vmul.f32 %v712, 1.442695
    %v732 = vpow.pop %v731
    %v733 = vmul.f32 %v713, 1.442695
    %v734 = vpow.pop %v733
    %v735 = vmul.f32 %v714, 1.442695
    %v736 = vpow.pop %v735
    %v737 = vmul.f32 %v715, 1.442695
    %v738 = vpow.pop %v737
    %v739 = vmul.f32 %v716, 1.442695
    %v740 = vpow.pop %v739
    %v741 = vmul.f32 %v717, 1.442695
    %v742 = vpow.pop %v741
    %v743 = vmul.f32 %v718, 1.442695
    %v744 = vpow.pop %v743
    %v745 = vmul.f32 %v719, 1.442695
    %v746 = vpow.pop %v745
    %v747 = vmul.f32 %v720, 1.442695
    %v748 = vpow.pop %v747
    %v749 = vmul.f32 %v721, 1.442695
    %v750 = vpow.pop %v749
    %v751 = vmul.f32 %v722, 1.442695
    %v752 = vpow.pop %v751
    %v753 = vmul.f32 %v723, 1.442695
    %v754 = vpow.pop %v753
    %v755 = vmul.f32 %v724, 1.442695
    %v756 = vpow.pop %v755
    %v757 = vmul.f32 %v726, 120.0
    %v758 = vmul.f32 %v728, 120.0
    %v759 = vmul.f32 %v730, 120.0
    %v760 = vmul.f32 %v732, 120.0
    %v761 = vmul.f32 %v734, 120.0
    %v762 = vmul.f32 %v736, 120.0
    %v763 = vmul.f32 %v738, 120.0
    %v764 = vmul.f32 %v740, 120.0
    %v765 = vmul.f32 %v742, 120.0
    %v766 = vmul.f32 %v744, 120.0
    %v767 = vmul.f32 %v746, 120.0
    %v768 = vmul.f32 %v748, 120.0
    %v769 = vmul.f32 %v750, 120.0
    %v770 = vmul.f32 %v752, 120.0
    %v771 = vmul.f32 %v754, 120.0
    %v772 = vmul.f32 %v756, 120.0
    %v773 = vsub.f32 %v693, %v757
    %v774 = vsub.f32 %v694, %v758
    %v775 = vsub.f32 %v695, %v759
    %v776 = vsub.f32 %v696, %v760
    %v777 = vsub.f32 %v697, %v761
    %v778 = vsub.f32 %v698, %v762
    %v779 = vsub.f32 %v699, %v763
    %v780 = vsub.f32 %v700, %v764
    %v781 = vsub.f32 %v701, %v765
    %v782 = vsub.f32 %v702, %v766
    %v783 = vsub.f32 %v703, %v767
    %v784 = vsub.f32 %v704, %v768
    %v785 = vsub.f32 %v705, %v769
    %v786 = vsub.f32 %v706, %v770
    %v787 = vsub.f32 %v707, %v771
    %v788 = vsub.f32 %v708, %v772
    %v789 = vlog2.pop %v773
    %v790 = vmul.f32 %v789, 0.6931472
    %v791 = vlog2.pop %v774
    %v792 = vmul.f32 %v791, 0.6931472
    %v793 = vlog2.pop %v775
    %v794 = vmul.f32 %v793, 0.6931472
    %v795 = vlog2.pop %v776
    %v796 = vmul.f32 %v795, 0.6931472
    %v797 = vlog2.pop %v777
    %v798 = vmul.f32 %v797, 0.6931472
    %v799 = vlog2.pop %v778
    %v800 = vmul.f32 %v799, 0.6931472
    %v801 = vlog2.pop %v779
    %v802 = vmul.f32 %v801, 0.6931472
    %v803 = vlog2.pop %v780
    %v804 = vmul.f32 %v803, 0.6931472
    %v805 = vlog2.pop %v781
    %v806 = vmul.f32 %v805, 0.6931472
    %v807 = vlog2.pop %v782
    %v808 = vmul.f32 %v807, 0.6931472
    %v809 = vlog2.pop %v783
    %v810 = vmul.f32 %v809, 0.6931472
    %v811 = vlog2.pop %v784
    %v812 = vmul.f32 %v811, 0.6931472
    %v813 = vlog2.pop %v785
    %v814 = vmul.f32 %v813, 0.6931472
    %v815 = vlog2.pop %v786
    %v816 = vmul.f32 %v815, 0.6931472
    %v817 = vlog2.pop %v787
    %v818 = vmul.f32 %v817, 0.6931472
    %v819 = vlog2.pop %v788
    %v820 = vmul.f32 %v819, 0.6931472
    %v821 = vadd.f32 %v677, %v790
    %v822 = vadd.f32 %v678, %v792
    %v823 = vadd.f32 %v679, %v794
    %v824 = vadd.f32 %v680, %v796
    %v825 = vadd.f32 %v681, %v798
    %v826 = vadd.f32 %v682, %v800
    %v827 = vadd.f32 %v683, %v802
    %v828 = vadd.f32 %v684, %v804
    %v829 = vadd.f32 %v685, %v806
    %v830 = vadd.f32 %v686, %v808
    %v831 = vadd.f32 %v687, %v810
    %v832 = vadd.f32 %v688, %v812
    %v833 = vadd.f32 %v689, %v814
    %v834 = vadd.f32 %v690, %v816
    %v835 = vadd.f32 %v691, %v818
    %v836 = vadd.f32 %v692, %v820
    %v837 = vsub.f32 %v821, %v631
    %v838 = vsub.f32 %v822, %v634
    %v839 = vsub.f32 %v823, %v637
    %v840 = vsub.f32 %v824, %v640
    %v841 = vsub.f32 %v825, %v643
    %v842 = vsub.f32 %v826, %v646
    %v843 = vsub.f32 %v827, %v649
    %v844 = vsub.f32 %v828, %v652
    %v845 = vsub.f32 %v829, %v655
    %v846 = vsub.f32 %v830, %v658
    %v847 = vsub.f32 %v831, %v661
    %v848 = vsub.f32 %v832, %v664
    %v849 = vsub.f32 %v833, %v667
    %v850 = vsub.f32 %v834, %v670
    %v851 = vsub.f32 %v835, %v673
    %v852 = vsub.f32 %v836, %v676
    %s853 = smul.u32 0, 128
    %v854 = vlaneseq
    %v855 = vshrl.u32 %v854, 7
    %v856 = vadd.s32 %v855, 8
    %v857 = vadd.s32 %v855, 16
    %v858 = vadd.s32 %v855, 24
    %v859 = vadd.s32 %v855, 32
    %v860 = vadd.s32 %v855, 40
    %v861 = vadd.s32 %v855, 48
    %v862 = vadd.s32 %v855, 56
    %v863 = vadd.s32 %v855, 64
    %v864 = vadd.s32 %v855, 72
    %v865 = vadd.s32 %v855, 80
    %v866 = vadd.s32 %v855, 88
    %v867 = vadd.s32 %v855, 96
    %v868 = vadd.s32 %v855, 104
    %v869 = vadd.s32 %v855, 112
    %v870 = vadd.s32 %v855, 120
    %v871 = vstv %s853
    %v872 = vadd.s32 %v871, %v855
    %v873 = vadd.s32 %v871, %v856
    %v874 = vadd.s32 %v871, %v857
    %v875 = vadd.s32 %v871, %v858
    %v876 = vadd.s32 %v871, %v859
    %v877 = vadd.s32 %v871, %v860
    %v878 = vadd.s32 %v871, %v861
    %v879 = vadd.s32 %v871, %v862
    %v880 = vadd.s32 %v871, %v863
    %v881 = vadd.s32 %v871, %v864
    %v882 = vadd.s32 %v871, %v865
    %v883 = vadd.s32 %v871, %v866
    %v884 = vadd.s32 %v871, %v867
    %v885 = vadd.s32 %v871, %v868
    %v886 = vadd.s32 %v871, %v869
    %v887 = vadd.s32 %v871, %v870
    %vm888 = vcmp.lt.s32.totalorder %v872, 8
    %vm889 = vcmp.lt.s32.totalorder %v873, 8
    %vm890 = vcmp.lt.s32.totalorder %v874, 8
    %vm891 = vcmp.lt.s32.totalorder %v875, 8
    %vm892 = vcmp.lt.s32.totalorder %v876, 8
    %vm893 = vcmp.lt.s32.totalorder %v877, 8
    %vm894 = vcmp.lt.s32.totalorder %v878, 8
    %vm895 = vcmp.lt.s32.totalorder %v879, 8
    %vm896 = vcmp.lt.s32.totalorder %v880, 8
    %vm897 = vcmp.lt.s32.totalorder %v881, 8
    %vm898 = vcmp.lt.s32.totalorder %v882, 8
    %vm899 = vcmp.lt.s32.totalorder %v883, 8
    %vm900 = vcmp.lt.s32.totalorder %v884, 8
    %vm901 = vcmp.lt.s32.totalorder %v885, 8
    %vm902 = vcmp.lt.s32.totalorder %v886, 8
    %vm903 = vcmp.lt.s32.totalorder %v887, 8
    %v904 = vsel %vm888, 1, 0
    %v905 = vsel %vm889, 1, 0
    %v906 = vsel %vm890, 1, 0
    %v907 = vsel %vm891, 1, 0
    %v908 = vsel %vm892, 1, 0
    %v909 = vsel %vm893, 1, 0
    %v910 = vsel %vm894, 1, 0
    %v911 = vsel %vm895, 1, 0
    %v912 = vsel %vm896, 1, 0
    %v913 = vsel %vm897, 1, 0
    %v914 = vsel %vm898, 1, 0
    %v915 = vsel %vm899, 1, 0
    %v916 = vsel %vm900, 1, 0
    %v917 = vsel %vm901, 1, 0
    %v918 = vsel %vm902, 1, 0
    %v919 = vsel %vm903, 1, 0
    %vm920 = vcmp.eq.s32.totalorder %v904, 1
    %vm921 = vcmp.eq.s32.totalorder %v905, 1
    %vm922 = vcmp.eq.s32.totalorder %v906, 1
    %vm923 = vcmp.eq.s32.totalorder %v907, 1
    %vm924 = vcmp.eq.s32.totalorder %v908, 1
    %vm925 = vcmp.eq.s32.totalorder %v909, 1
    %vm926 = vcmp.eq.s32.totalorder %v910, 1
    %vm927 = vcmp.eq.s32.totalorder %v911, 1
    %vm928 = vcmp.eq.s32.totalorder %v912, 1
    %vm929 = vcmp.eq.s32.totalorder %v913, 1
    %vm930 = vcmp.eq.s32.totalorder %v914, 1
    %vm931 = vcmp.eq.s32.totalorder %v915, 1
    %vm932 = vcmp.eq.s32.totalorder %v916, 1
    %vm933 = vcmp.eq.s32.totalorder %v917, 1
    %vm934 = vcmp.eq.s32.totalorder %v918, 1
    %vm935 = vcmp.eq.s32.totalorder %v919, 1
    %v936 = vsel %vm920, %v837, 0.0
    %v937 = vsel %vm921, %v838, 0.0
    %v938 = vsel %vm922, %v839, 0.0
    %v939 = vsel %vm923, %v840, 0.0
    %v940 = vsel %vm924, %v841, 0.0
    %v941 = vsel %vm925, %v842, 0.0
    %v942 = vsel %vm926, %v843, 0.0
    %v943 = vsel %vm927, %v844, 0.0
    %v944 = vsel %vm928, %v845, 0.0
    %v945 = vsel %vm929, %v846, 0.0
    %v946 = vsel %vm930, %v847, 0.0
    %v947 = vsel %vm931, %v848, 0.0
    %v948 = vsel %vm932, %v849, 0.0
    %v949 = vsel %vm933, %v850, 0.0
    %v950 = vsel %vm934, %v851, 0.0
    %v951 = vsel %vm935, %v852, 0.0
    %vm952 = vcmask 7168
    %953 = vst.msk [vmem:[%s2] sm:$0xff] %vm952, %v936
    %954 = vst.msk [vmem:[%s2 + $0x8] sm:$0xff] %vm952, %v937
    %955 = vst.msk [vmem:[%s2 + $0x10] sm:$0xff] %vm952, %v938
    %956 = vst.msk [vmem:[%s2 + $0x18] sm:$0xff] %vm952, %v939
    %957 = vst.msk [vmem:[%s2 + $0x20] sm:$0xff] %vm952, %v940
    %958 = vst.msk [vmem:[%s2 + $0x28] sm:$0xff] %vm952, %v941
    %959 = vst.msk [vmem:[%s2 + $0x30] sm:$0xff] %vm952, %v942
    %960 = vst.msk [vmem:[%s2 + $0x38] sm:$0xff] %vm952, %v943
    %961 = vst.msk [vmem:[%s2 + $0x40] sm:$0xff] %vm952, %v944
    %962 = vst.msk [vmem:[%s2 + $0x48] sm:$0xff] %vm952, %v945
    %963 = vst.msk [vmem:[%s2 + $0x50] sm:$0xff] %vm952, %v946
    %964 = vst.msk [vmem:[%s2 + $0x58] sm:$0xff] %vm952, %v947
    %965 = vst.msk [vmem:[%s2 + $0x60] sm:$0xff] %vm952, %v948
    %966 = vst.msk [vmem:[%s2 + $0x68] sm:$0xff] %vm952, %v949
    %967 = vst.msk [vmem:[%s2 + $0x70] sm:$0xff] %vm952, %v950
    %968 = vst.msk [vmem:[%s2 + $0x78] sm:$0xff] %vm952, %v951
  $region17: #{tpu_custom_call.1} parent=0 // pred_fallthru
    _
  // Predicated region
  $region18: #{tpu_custom_call.1} parent=0 // pred_check
    _
  $region19: #{tpu_custom_call.1} parent=0 // pred_check_branch
    %970 = sbr.rel (0) target = $region21
  $region20: #{tpu_custom_call.1} parent=0 // pred_region
    _
  $region21: #{tpu_custom_call.1} parent=0 // pred_fallthru
    _
  // Predicated region
  $region22: #{tpu_custom_call.1} parent=0 // pred_check
    _
  $region23: #{tpu_custom_call.1} parent=0 // pred_check_branch
    %972 = sbr.rel (0) target = $region25
  $region24: #{tpu_custom_call.1} parent=0 // pred_region
    _
  $region25: #{tpu_custom_call.1} parent=0 // pred_fallthru
    _

</llo_original>
